<compile_context>
chip_gen: v7x
topology: tpu7x:2x2x1
jax: 0.10.0
libtpu: 0.0.40
codegen_flags: <defaults>
</compile_context>

<pallas_src>
import functools

import jax
import jax.numpy as jnp
from jax import lax
from jax.experimental import pallas as pl
from jax.experimental.pallas import tpu as pltpu

_LANE = 128
_SUBLANE = 8
_MIN_BLOCK_BYTES = 512 * 1024     # amortize the ~0.35 us fixed per-grid-step cost


def _cdiv(a, b):
    return (a + b - 1) // b


def _vmem_capacity_bytes():
    try:
        info = pltpu.get_tpu_info()
        cap = int(getattr(info, "vmem_capacity_bytes", 0) or 0)
        if cap > 0:
            return cap
    except Exception:
        pass
    return 64 * 1024 * 1024       # conservative default (v7x per-TC VMEM)


def _budgets(itemsize):
    """Returns (budget_elems, target_elems, vmem_limit_bytes).

    budget_elems: max elements in the streaming x block such that the total
      in-flight VMEM (2x in + 2x out double buffers + ~2 f32 temps) stays
      inside the per-generation budget.
    target_elems: DMA sweet-spot tile size (bigger tiles on faster-HBM chips
      are nice, but VMEM is the binding constraint on v7x).
    """
    cap = _vmem_capacity_bytes()
    budget = min(48 * 1024 * 1024, int(cap * 0.6))
    bytes_per_elem = 4 * itemsize + 8          # 2 in + 2 out buffers + f32 temps
    budget_elems = max(1, budget // bytes_per_elem)
    target = min(6 * 1024 * 1024, max(2 * 1024 * 1024, cap // 12))
    target_elems = max(1, target // itemsize)
    vmem_limit = int(min(cap * 9 // 10, max(32 * 1024 * 1024, budget * 3 // 2)))
    return budget_elems, target_elems, vmem_limit


def _choose_lane_tile(C, rows, max_block_elems):
    """Lane (last-dim) tile: a multiple of 128, or the full C (no padding)."""
    if C <= _LANE:
        return C
    n_lane_blocks = _cdiv(C, _LANE)
    afford = max(1, max_block_elems // max(rows * _LANE, 1))
    use = min(n_lane_blocks, afford)
    if use >= n_lane_blocks:
        return C                       # one block covers all channels
    return _LANE * use                 # multiple of 128, partial boundary block OK


def _choose_elem_tiles(T, C, max_block_elems):
    """(t_tile, c_tile) for purely elementwise kernels."""
    if C <= _LANE:
        c_tile = C
    else:
        n_lane_blocks = _cdiv(C, _LANE)
        afford = max(1, max_block_elems // (_SUBLANE * _LANE))
        use = min(n_lane_blocks, afford)
        c_tile = C if use >= n_lane_blocks else _LANE * use
    t_afford = max(1, max_block_elems // c_tile)
    if t_afford >= T:
        t_tile = T
    else:
        t_tile = max(_SUBLANE, (t_afford // _SUBLANE) * _SUBLANE)
    return t_tile, c_tile


def _choose_b_tile(batch, per_batch_elems, max_block_elems, itemsize, other_grid):
    """Pack batches per grid step when blocks are tiny, but keep >=2 parallel blocks."""
    cap = max(1, max_block_elems // max(per_batch_elems, 1))
    want = max(1, _MIN_BLOCK_BYTES // max(per_batch_elems * itemsize, 1))
    bt = max(1, min(batch, cap, want))
    if other_grid <= 1 and batch >= 2:           # v7x: 2 TensorCores need >=2 blocks
        bt = min(bt, max(1, batch // 2))
    return bt


# ----------------------------------------------------------------------------
# Kernels
# ----------------------------------------------------------------------------

def _norm_kernel(x_ref, y_ref, mean_ref, std_ref, *, eps):
    # Single-pass: full T in-block, reduce over time (axis=1) only.
    x = x_ref[...].astype(jnp.float32)
    mean = jnp.mean(x, axis=1, keepdims=True)                 # (Bt, 1, Ct)
    xc = x - mean
    var = jnp.mean(xc * xc, axis=1, keepdims=True)            # biased variance
    inv = lax.rsqrt(var + eps)                                # per-channel (EUP)
    y_ref[...] = (xc * inv).astype(y_ref.dtype)               # broadcast mul (VALU)
    mean_ref[...] = mean.astype(mean_ref.dtype)
    std_ref[...] = jnp.sqrt(var + eps).astype(std_ref.dtype)


def _stats_kernel(x_ref, mean_ref, std_ref, sum_ref, ssq_ref, *,
                  eps, t_total, t_tile, mask_t):
    # Two-pass path, pass 1: accumulate sum / sum-of-squares over the T grid axis.
    t_idx = pl.program_id(2)

    @pl.when(t_idx == 0)
    def _():
        sum_ref[...] = jnp.zeros_like(sum_ref)
        ssq_ref[...] = jnp.zeros_like(ssq_ref)

    x = x_ref[...].astype(jnp.float32)
    if mask_t:  # partial boundary block along T: zero out-of-range rows
        row = t_idx * t_tile + lax.broadcasted_iota(jnp.int32, x.shape, 1)
        x = jnp.where(row < t_total, x, 0.0)
    sum_ref[...] += jnp.sum(x, axis=1, keepdims=True)
    ssq_ref[...] += jnp.sum(x * x, axis=1, keepdims=True)

    @pl.when(t_idx == pl.num_programs(2) - 1)
    def _():
        inv_n = 1.0 / float(t_total)
        mean = sum_ref[...] * inv_n
        var = jnp.maximum(ssq_ref[...] * inv_n - mean * mean, 0.0)
        mean_ref[...] = mean.astype(mean_ref.dtype)
        std_ref[...] = jnp.sqrt(var + eps).astype(std_ref.dtype)


def _normalize_kernel(x_ref, mean_ref, std_ref, y_ref):
    # Two-pass path, pass 2: y = (x - mean) / std, f32 math, per-channel reciprocal.
    x = x_ref[...].astype(jnp.float32)
    m = mean_ref[...].astype(jnp.float32)
    inv = 1.0 / std_ref[...].astype(jnp.float32)
    y_ref[...] = ((x - m) * inv).astype(y_ref.dtype)


def _denorm_kernel(x_ref, mean_ref, std_ref, y_ref):
    # Pure elementwise: y = x * std + mean, computed in f32 (free; v5e-friendly).
    x = x_ref[...].astype(jnp.float32)
    s = std_ref[...].astype(jnp.float32)
    m = mean_ref[...].astype(jnp.float32)
    y_ref[...] = (x * s + m).astype(y_ref.dtype)


# ----------------------------------------------------------------------------
# Wrappers
# ----------------------------------------------------------------------------

def _forward_single_pass(x, eps, budget_elems, target_elems, vmem_limit):
    B, T, C = x.shape
    itemsize = jnp.dtype(x.dtype).itemsize
    max_elems = min(budget_elems, target_elems)

    c_tile = _choose_lane_tile(C, T, max_elems)
    grid_c = _cdiv(C, c_tile)
    b_tile = _choose_b_tile(B, T * c_tile, max_elems, itemsize, grid_c)
    grid = (_cdiv(B, b_tile), grid_c)

    kernel = functools.partial(_norm_kernel, eps=eps)
    out_shapes = (
        jax.ShapeDtypeStruct((B, T, C), x.dtype),
        jax.ShapeDtypeStruct((B, 1, C), x.dtype),
        jax.ShapeDtypeStruct((B, 1, C), x.dtype),
    )
    return pl.pallas_call(
        kernel,
        out_shape=out_shapes,
        grid_spec=pltpu.PrefetchScalarGridSpec(
            num_scalar_prefetch=0,
            grid=grid,
            in_specs=[pl.BlockSpec((b_tile, T, c_tile), lambda b, c: (b, 0, c))],
            out_specs=[
                pl.BlockSpec((b_tile, T, c_tile), lambda b, c: (b, 0, c)),
                pl.BlockSpec((b_tile, 1, c_tile), lambda b, c: (b, 0, c)),
                pl.BlockSpec((b_tile, 1, c_tile), lambda b, c: (b, 0, c)),
            ],
        ),
        compiler_params=pltpu.CompilerParams(
            dimension_semantics=("parallel", "parallel"),
            vmem_limit_bytes=vmem_limit),
    )(x)


def _forward_two_pass(x, eps, budget_elems, target_elems, vmem_limit):
    """Long-T path: T split over an 'arbitrary' grid axis with accumulators."""
    B, T, C = x.shape
    itemsize = jnp.dtype(x.dtype).itemsize
    max_elems = min(budget_elems, target_elems)

    t_tile, c_tile = _choose_elem_tiles(T, C, max_elems)
    grid_c = _cdiv(C, c_tile)
    grid_t = _cdiv(T, t_tile)
    b_tile = _choose_b_tile(B, t_tile * c_tile, max_elems, itemsize, grid_c * grid_t)
    grid = (_cdiv(B, b_tile), grid_c, grid_t)      # t innermost (accumulator axis)

    stats_kernel = functools.partial(
        _stats_kernel, eps=eps, t_total=T, t_tile=t_tile, mask_t=(T % t_tile != 0))
    mean, std = pl.pallas_call(
        stats_kernel,
        out_shape=(jax.ShapeDtypeStruct((B, 1, C), x.dtype),
                   jax.ShapeDtypeStruct((B, 1, C), x.dtype)),
        grid_spec=pltpu.PrefetchScalarGridSpec(
            num_scalar_prefetch=0,
            grid=grid,
            in_specs=[pl.BlockSpec((b_tile, t_tile, c_tile),
                                   lambda b, c, t: (b, t, c))],
            out_specs=[
                pl.BlockSpec((b_tile, 1, c_tile), lambda b, c, t: (b, 0, c)),
                pl.BlockSpec((b_tile, 1, c_tile), lambda b, c, t: (b, 0, c)),
            ],
            scratch_shapes=[pltpu.VMEM((b_tile, 1, c_tile), jnp.float32),
                            pltpu.VMEM((b_tile, 1, c_tile), jnp.float32)],
        ),
        compiler_params=pltpu.CompilerParams(
            dimension_semantics=("parallel", "parallel", "arbitrary"),
            vmem_limit_bytes=vmem_limit),
    )(x)

    y = pl.pallas_call(
        _normalize_kernel,
        out_shape=jax.ShapeDtypeStruct((B, T, C), x.dtype),
        grid_spec=pltpu.PrefetchScalarGridSpec(
            num_scalar_prefetch=0,
            grid=grid,                               # t innermost: stats DMA'd once per (b, c)
            in_specs=[
                pl.BlockSpec((b_tile, t_tile, c_tile), lambda b, c, t: (b, t, c)),
                pl.BlockSpec((b_tile, 1, c_tile), lambda b, c, t: (b, 0, c)),
                pl.BlockSpec((b_tile, 1, c_tile), lambda b, c, t: (b, 0, c)),
            ],
            out_specs=pl.BlockSpec((b_tile, t_tile, c_tile),
                                   lambda b, c, t: (b, t, c)),
        ),
        compiler_params=pltpu.CompilerParams(
            dimension_semantics=("parallel", "parallel", "arbitrary"),
            vmem_limit_bytes=vmem_limit),
    )(x, mean, std)
    return y, mean, std


def instance_norm_forward(x, eps=1e-5, two_pass=None):
    """mode='norm': returns (x_norm, mean, stdev) matching PyTorch shapes/semantics."""
    B, T, C = x.shape
    itemsize = jnp.dtype(x.dtype).itemsize
    budget_elems, target_elems, vmem_limit = _budgets(itemsize)
    if two_pass is None:
        # Single-pass keeps full T in-block; fall back to two-pass when even the
        # narrowest lane tile would exceed the per-generation VMEM budget.
        two_pass = T * min(C, _LANE) > budget_elems
    if two_pass:
        return _forward_two_pass(x, eps, budget_elems, target_elems, vmem_limit)
    return _forward_single_pass(x, eps, budget_elems, target_elems, vmem_limit)


def instance_norm_denorm(x, mean, stdev):
    """mode='denorm': x * stdev + mean."""
    B, T, C = x.shape
    itemsize = jnp.dtype(x.dtype).itemsize
    budget_elems, target_elems, vmem_limit = _budgets(itemsize)
    max_elems = min(budget_elems, target_elems)

    t_tile, c_tile = _choose_elem_tiles(T, C, max_elems)
    grid_c = _cdiv(C, c_tile)
    grid_t = _cdiv(T, t_tile)
    b_tile = _choose_b_tile(B, t_tile * c_tile, max_elems, itemsize, grid_c * grid_t)
    grid = (_cdiv(B, b_tile), grid_c, grid_t)        # t innermost: stats fetched once per (b, c)

    return pl.pallas_call(
        _denorm_kernel,
        out_shape=jax.ShapeDtypeStruct((B, T, C), x.dtype),
        grid_spec=pltpu.PrefetchScalarGridSpec(
            num_scalar_prefetch=0,
            grid=grid,
            in_specs=[
                pl.BlockSpec((b_tile, t_tile, c_tile), lambda b, c, t: (b, t, c)),
                pl.BlockSpec((b_tile, 1, c_tile), lambda b, c, t: (b, 0, c)),
                pl.BlockSpec((b_tile, 1, c_tile), lambda b, c, t: (b, 0, c)),
            ],
            out_specs=pl.BlockSpec((b_tile, t_tile, c_tile),
                                   lambda b, c, t: (b, t, c)),
        ),
        compiler_params=pltpu.CompilerParams(
            dimension_semantics=("parallel", "parallel", "arbitrary"),
            vmem_limit_bytes=vmem_limit),
    )(x, mean, stdev)


class InstanceNorm:
    """JAX/Pallas port of the PyTorch InstanceNorm module (stateful stats)."""

    def __init__(self, eps=1e-5):
        self.eps = eps
        self.mean = None
        self.stdev = None

    def __call__(self, x, mode: str):
        if mode == "norm":
            y, self.mean, self.stdev = instance_norm_forward(x, self.eps)
            return y
        elif mode == "denorm":
            return instance_norm_denorm(x, self.mean, self.stdev)
        else:
            raise NotImplementedError


if __name__ == "__main__":
    key = jax.random.PRNGKey(0)
    B, T, C = 2, 8, 32
    x = jax.random.normal(key, (B, T, C), dtype=jnp.float32) * 3.0 + 1.5

    m = InstanceNorm(eps=1e-5)

    # norm pass (single-pass path)
    y = jax.block_until_ready(m(x, "norm"))

    # pure-JAX reference
    ref_mean = jnp.mean(x, axis=1, keepdims=True)
    ref_var = jnp.var(x, axis=1, keepdims=True)            # biased (unbiased=False)
    ref_std = jnp.sqrt(ref_var + 1e-5)
    y_ref = (x - ref_mean) / ref_std
    assert jnp.allclose(y, y_ref, atol=1e-5, rtol=1e-5)
    assert jnp.allclose(m.mean, ref_mean, atol=1e-5, rtol=1e-5)
    assert jnp.allclose(m.stdev, ref_std, atol=1e-5, rtol=1e-5)

    # denorm pass (should recover x)
    x_rec = jax.block_until_ready(m(y, "denorm"))
    assert jnp.allclose(x_rec, x, atol=1e-4, rtol=1e-4)

    # explicitly exercise the long-T two-pass path at small shapes
    y2, mean2, std2 = instance_norm_forward(x, eps=1e-5, two_pass=True)
    y2 = jax.block_until_ready(y2)
    assert jnp.allclose(y2, y_ref, atol=1e-5, rtol=1e-5)
    assert jnp.allclose(mean2, ref_mean, atol=1e-5, rtol=1e-5)
    assert jnp.allclose(std2, ref_std, atol=1e-5, rtol=1e-5)

    print("KERNEL_OK")
</pallas_src>

<mosaic_0001>
module attributes {stable_mosaic.version = 11 : i64} {
  func.func @_norm_kernel(%arg0: i32, %arg1: i32, %arg2: memref<1x8x32xf32, #tpu.memory_space<vmem>>, %arg3: memref<1x8x32xf32, #tpu.memory_space<vmem>>, %arg4: memref<1x1x32xf32, #tpu.memory_space<vmem>>, %arg5: memref<1x1x32xf32, #tpu.memory_space<vmem>>) attributes {dimension_semantics = [#tpu.dimension_semantics<parallel>, #tpu.dimension_semantics<parallel>], iteration_bounds = array<i64: 2, 1>, scalar_prefetch = 0 : i64, scratch_operands = 0 : i64, tpu.core_type = #tpu.core_type<tc>, window_params = [{transform_indices = @transform_0, window_bounds = array<i64: 1, 8, 32>}, {transform_indices = @transform_1, window_bounds = array<i64: 1, 8, 32>}, {transform_indices = @transform_2, window_bounds = array<i64: 1, 1, 32>}, {transform_indices = @transform_3, window_bounds = array<i64: 1, 1, 32>}]} {
    %c0 = arith.constant 0 : index
    %c0_0 = arith.constant 0 : index
    %c0_1 = arith.constant 0 : index
    %0 = vector.load %arg2[%c0, %c0_0, %c0_1] : memref<1x8x32xf32, #tpu.memory_space<vmem>>, vector<1x8x32xf32>
    %cst = arith.constant dense<0.000000e+00> : vector<1x32xf32>
    %1 = vector.multi_reduction <add>, %0, %cst [1] : vector<1x8x32xf32> to vector<1x32xf32>
    %2 = vector.shape_cast %1 : vector<1x32xf32> to vector<1x1x32xf32>
    %cst_2 = arith.constant 8.000000e+00 : f32
    %3 = vector.broadcast %cst_2 : f32 to vector<1x1x32xf32>
    %4 = arith.divf %2, %3 : vector<1x1x32xf32>
    %5 = vector.broadcast %4 : vector<1x1x32xf32> to vector<1x8x32xf32>
    %6 = arith.subf %0, %5 : vector<1x8x32xf32>
    %7 = arith.mulf %6, %6 : vector<1x8x32xf32>
    %cst_3 = arith.constant dense<0.000000e+00> : vector<1x32xf32>
    %8 = vector.multi_reduction <add>, %7, %cst_3 [1] : vector<1x8x32xf32> to vector<1x32xf32>
    %9 = vector.shape_cast %8 : vector<1x32xf32> to vector<1x1x32xf32>
    %cst_4 = arith.constant 8.000000e+00 : f32
    %10 = vector.broadcast %cst_4 : f32 to vector<1x1x32xf32>
    %11 = arith.divf %9, %10 : vector<1x1x32xf32>
    %cst_5 = arith.constant 9.99999974E-6 : f32
    %12 = vector.broadcast %cst_5 : f32 to vector<1x1x32xf32>
    %13 = arith.addf %11, %12 : vector<1x1x32xf32>
    %14 = math.rsqrt %13 : vector<1x1x32xf32>
    %15 = vector.broadcast %14 : vector<1x1x32xf32> to vector<1x8x32xf32>
    %16 = arith.mulf %6, %15 : vector<1x8x32xf32>
    %c0_6 = arith.constant 0 : index
    %c0_7 = arith.constant 0 : index
    %c0_8 = arith.constant 0 : index
    %17 = vector.load %arg3[%c0_6, %c0_7, %c0_8] : memref<1x8x32xf32, #tpu.memory_space<vmem>>, vector<1x8x32xf32>
    tpu.vector_store %arg3[%c0_6, %c0_7, %c0_8], %16 {strides = array<i32>} : memref<1x8x32xf32, #tpu.memory_space<vmem>>, vector<1x8x32xf32>,
    %c0_9 = arith.constant 0 : index
    %c0_10 = arith.constant 0 : index
    %c0_11 = arith.constant 0 : index
    %18 = vector.load %arg4[%c0_9, %c0_10, %c0_11] : memref<1x1x32xf32, #tpu.memory_space<vmem>>, vector<1x1x32xf32>
    tpu.vector_store %arg4[%c0_9, %c0_10, %c0_11], %4 {strides = array<i32>} : memref<1x1x32xf32, #tpu.memory_space<vmem>>, vector<1x1x32xf32>,
    %cst_12 = arith.constant 9.99999974E-6 : f32
    %19 = vector.broadcast %cst_12 : f32 to vector<1x1x32xf32>
    %20 = arith.addf %11, %19 : vector<1x1x32xf32>
    %21 = math.sqrt %20 : vector<1x1x32xf32>
    %c0_13 = arith.constant 0 : index
    %c0_14 = arith.constant 0 : index
    %c0_15 = arith.constant 0 : index
    %22 = vector.load %arg5[%c0_13, %c0_14, %c0_15] : memref<1x1x32xf32, #tpu.memory_space<vmem>>, vector<1x1x32xf32>
    tpu.vector_store %arg5[%c0_13, %c0_14, %c0_15], %21 {strides = array<i32>} : memref<1x1x32xf32, #tpu.memory_space<vmem>>, vector<1x1x32xf32>,
    return
  }
  func.func @transform_0(%arg0: i32, %arg1: i32) -> (i32, i32, i32) {
    %c0_i32 = arith.constant 0 : i32
    %c0_i32_0 = arith.constant 0 : i32
    return %arg0, %c0_i32, %arg1 : i32, i32, i32
  }
  func.func @transform_1(%arg0: i32, %arg1: i32) -> (i32, i32, i32) {
    %c0_i32 = arith.constant 0 : i32
    %c0_i32_0 = arith.constant 0 : i32
    return %arg0, %c0_i32, %arg1 : i32, i32, i32
  }
  func.func @transform_2(%arg0: i32, %arg1: i32) -> (i32, i32, i32) {
    %c0_i32 = arith.constant 0 : i32
    %c0_i32_0 = arith.constant 0 : i32
    return %arg0, %c0_i32, %arg1 : i32, i32, i32
  }
  func.func @transform_3(%arg0: i32, %arg1: i32) -> (i32, i32, i32) {
    %c0_i32 = arith.constant 0 : i32
    %c0_i32_0 = arith.constant 0 : i32
    return %arg0, %c0_i32, %arg1 : i32, i32, i32
  }
}

</mosaic_0001>

<llo_original>
// kernel: tpu_custom_call.1
$region0: #{tpu_custom_call.1}
  #allocation0 [shape = 'u32[]', space=smem, size = 0x4, offset = 0x4, fixed_abs, tag = 'smem constant byte address 0x4 - core index']
  #allocation1 [shape = 'u32[144,128]{1,0:T(1,128)}', space=vmem, size = 0x12000, scoped, tag = 'internal scratch']
  %s0 = inlined_call_operand.hbm [shape: f32[2,8,32], index: 0, kind: input, shape index: {}]
  %s1 = inlined_call_operand.hbm [shape: f32[2,8,32], index: 1, kind: output, shape index: {0}]
  %s2 = inlined_call_operand.hbm [shape: f32[2,1,32], index: 2, kind: output, shape index: {1}]
  %s3 = inlined_call_operand.hbm [shape: f32[2,1,32], index: 3, kind: output, shape index: {2}]
  %4 = xla_tuple %s1, %s2, %s3
  %s5 = sld [smem:[#allocation0]]
  $region57: #{tpu_custom_call.1} parent=0
    _
  %s7 = ssub.s32 1, %s5
  %s8 = scalar_select 0, %s7, %s5
  $region1: #{tpu_custom_call.1} parent=0
    #allocation2 [shape = 'u8[8192]{0}', space=vmem, size = 0x2000, scoped, tag = 'input window, operand 0']
    #allocation3 [shape = 's32[2]{0}', space=sflag, size = 0x8, scoped, tag = 'scoped memory for tpu_custom_call.1']
    #allocation4 [shape = 's32[2]{0}', space=sflag, size = 0x8, scoped, tag = 'scoped memory for tpu_custom_call.1']
    #allocation5 [shape = 'u8[8192]{0}', space=vmem, size = 0x2000, scoped, tag = 'output window, operand 0']
    #allocation6 [shape = 'u8[1024]{0}', space=vmem, size = 0x400, scoped, tag = 'output window, operand 1']
    #allocation7 [shape = 's32[2]{0}', space=sflag, size = 0x8, scoped, tag = 'scoped memory for tpu_custom_call.1']
    #allocation8 [shape = 'u8[1024]{0}', space=vmem, size = 0x400, scoped, tag = 'output window, operand 2']
    %9 = vsyncpa [#allocation3], 0
    %s10 = scalar_lea.sflag [#allocation3], 1
    %11 = vsyncpa %s10, 0
    %12 = vsyncpa [#allocation4], 0
    %s13 = scalar_lea.sflag [#allocation4], 1
    %14 = vsyncpa %s13, 0
    %15 = vsyncpa [#allocation7], 0
    %s16 = scalar_lea.sflag [#allocation7], 1
    %17 = vsyncpa %s16, 0
    loop: start=0, step=1, limit=4
    $region2: #{tpu_custom_call.1} parent=1 // loop_pre_header
      _
    $region3: #{tpu_custom_call.1} parent=1 // loop_header
      %s19 = sphi 0, %s23
      %p20 = scmp.ge.s32.totalorder %s19, 4
      %s26 = sphi 0, %s38
      %s27 = sphi 0, %s34
      %s28 = sphi 0, %s26
      %s29 = sphi 0, %s27
      %s30 = sphi 0, %s28
      %s31 = sphi 0, %s29
      %s43 = sphi 0, %s45
      %s46 = sphi 0, %s43
      %s47 = sphi 0, %s46
      %s63 = sphi 0, %s47
      %s71 = sphi 0, %s73
      %s74 = sphi 0, %s71
      %s75 = sphi 0, %s74
      %s91 = sphi 0, %s75
      %s99 = sphi 0, %s101
      %s102 = sphi 0, %s99
      %s103 = sphi 0, %s102
      %s119 = sphi 0, %s103
      %s127 = sphi 0, %s129
      %s130 = sphi 0, %s127
      %s131 = sphi 0, %s130
      %s147 = sphi 0, %s131
    $region4: #{tpu_custom_call.1} parent=1 // loop_header_branch
      %22 = sbr.rel (%p20) target = $region8
    $region5: #{tpu_custom_call.1} parent=1 // loop_body
      %s24 = ssub.s32 %s19, 1
      %s25 = ssub.s32 %s19, 2
      %s32 = sadd.s32 1, %s27
      %p33 = scmp.ge.s32.totalorder %s32, 1
      %s34 = scalar_select %p33, 0, %s32
      %s35 = sadd.s32 1, %s26
      %s36 = scalar_select %p33, %s35, %s26
      %p37 = scmp.ge.s32.totalorder %s36, 2
      %s38 = scalar_select %p37, 0, %s36
      %s39 = ssub.s32 %s26, %s38
      %s40 = ssub.s32 %s27, %s34
      %s41 = sor.u32 %s39, %s40
      %p42 = scmp.eq.s32.totalorder %s41, 0
      %s44 = sadd.s32 %s43, 1
      %s45 = scalar_select %p42, %s43, %s44
      %p48 = pneg %p42
      %p49 = scmp.eq.s32.totalorder %s19, 1
      %p50 = por %p48, %p49
      %p51 = scmp.ne.s32.totalorder %s43, %s46
      %p52 = scmp.eq.s32.totalorder %s19, 0
      %p53 = por %p51, %p52
      %p54 = scmp.ne.s32.totalorder %s43, %s46
      %p55 = scmp.eq.s32.totalorder %s24, 1
      %p56 = por %p54, %p55
      %p57 = scmp.ne.s32.totalorder %s46, %s47
      %p58 = scmp.eq.s32.totalorder %s24, 0
      %p59 = por %p57, %p58
      %p60 = scmp.ne.s32.totalorder %s46, %s47
      %p61 = scmp.eq.s32.totalorder %s25, 1
      %p62 = por %p60, %p61
      %p64 = scmp.ne.s32.totalorder %s47, %s63
      %p65 = scmp.eq.s32.totalorder %s25, 0
      %p66 = por %p64, %p65
      %s67 = ssub.s32 %s26, %s38
      %s68 = ssub.s32 %s27, %s34
      %s69 = sor.u32 %s67, %s68
      %p70 = scmp.eq.s32.totalorder %s69, 0
      %s72 = sadd.s32 %s71, 1
      %s73 = scalar_select %p70, %s71, %s72
      %p76 = pneg %p70
      %p77 = scmp.eq.s32.totalorder %s19, 1
      %p78 = por %p76, %p77
      %p79 = scmp.ne.s32.totalorder %s71, %s74
      %p80 = scmp.eq.s32.totalorder %s19, 0
      %p81 = por %p79, %p80
      %p82 = scmp.ne.s32.totalorder %s71, %s74
      %p83 = scmp.eq.s32.totalorder %s24, 1
      %p84 = por %p82, %p83
      %p85 = scmp.ne.s32.totalorder %s74, %s75
      %p86 = scmp.eq.s32.totalorder %s24, 0
      %p87 = por %p85, %p86
      %p88 = scmp.ne.s32.totalorder %s74, %s75
      %p89 = scmp.eq.s32.totalorder %s25, 1
      %p90 = por %p88, %p89
      %p92 = scmp.ne.s32.totalorder %s75, %s91
      %p93 = scmp.eq.s32.totalorder %s25, 0
      %p94 = por %p92, %p93
      %s95 = ssub.s32 %s26, %s38
      %s96 = ssub.s32 %s27, %s34
      %s97 = sor.u32 %s95, %s96
      %p98 = scmp.eq.s32.totalorder %s97, 0
      %s100 = sadd.s32 %s99, 1
      %s101 = scalar_select %p98, %s99, %s100
      %p104 = pneg %p98
      %p105 = scmp.eq.s32.totalorder %s19, 1
      %p106 = por %p104, %p105
      %p107 = scmp.ne.s32.totalorder %s99, %s102
      %p108 = scmp.eq.s32.totalorder %s19, 0
      %p109 = por %p107, %p108
      %p110 = scmp.ne.s32.totalorder %s99, %s102
      %p111 = scmp.eq.s32.totalorder %s24, 1
      %p112 = por %p110, %p111
      %p113 = scmp.ne.s32.totalorder %s102, %s103
      %p114 = scmp.eq.s32.totalorder %s24, 0
      %p115 = por %p113, %p114
      %p116 = scmp.ne.s32.totalorder %s102, %s103
      %p117 = scmp.eq.s32.totalorder %s25, 1
      %p118 = por %p116, %p117
      %p120 = scmp.ne.s32.totalorder %s103, %s119
      %p121 = scmp.eq.s32.totalorder %s25, 0
      %p122 = por %p120, %p121
      %s123 = ssub.s32 %s26, %s38
      %s124 = ssub.s32 %s27, %s34
      %s125 = sor.u32 %s123, %s124
      %p126 = scmp.eq.s32.totalorder %s125, 0
      %s128 = sadd.s32 %s127, 1
      %s129 = scalar_select %p126, %s127, %s128
      %p132 = pneg %p126
      %p133 = scmp.eq.s32.totalorder %s19, 1
      %p134 = por %p132, %p133
      %p135 = scmp.ne.s32.totalorder %s127, %s130
      %p136 = scmp.eq.s32.totalorder %s19, 0
      %p137 = por %p135, %p136
      %p138 = scmp.ne.s32.totalorder %s127, %s130
      %p139 = scmp.eq.s32.totalorder %s24, 1
      %p140 = por %p138, %p139
      %p141 = scmp.ne.s32.totalorder %s130, %s131
      %p142 = scmp.eq.s32.totalorder %s24, 0
      %p143 = por %p141, %p142
      %p144 = scmp.ne.s32.totalorder %s130, %s131
      %p145 = scmp.eq.s32.totalorder %s25, 1
      %p146 = por %p144, %p145
      %p148 = scmp.ne.s32.totalorder %s131, %s147
      %p149 = scmp.eq.s32.totalorder %s25, 0
      %p150 = por %p148, %p149
      %p151 = scmp.le.s32.totalorder 1, %s19
      %p152 = scmp.lt.s32.totalorder %s19, 3
      %p153 = pnand %p151, %p152
      %p154 = pneg %p153
      // Predicated region
      $region9: #{tpu_custom_call.1} parent=5 // pred_check
        _
      $region10: #{tpu_custom_call.1} parent=5 // pred_check_branch
        %156 = sbr.rel (%p153) target = $region12
      $region11: #{tpu_custom_call.1} parent=5 // pred_region
        %s157 = ssub.s32 %s19, 1
      $region12: #{tpu_custom_call.1} parent=5 // pred_fallthru
        _
      %p158 = scmp.lt.s32.totalorder %s19, 2
      // Predicated region
      $region13: #{tpu_custom_call.1} parent=5 // pred_check
        %p159 = pneg %p158
      $region14: #{tpu_custom_call.1} parent=5 // pred_check_branch
        %161 = sbr.rel (%p159) target = $region16
      $region15: #{tpu_custom_call.1} parent=5 // pred_region
        // Predicated region
        $region17: #{tpu_custom_call.1} parent=15 // pred_check
          %p162 = pneg %p53
        $region18: #{tpu_custom_call.1} parent=15 // pred_check_branch
          %164 = sbr.rel (%p162) target = $region20
        $region19: #{tpu_custom_call.1} parent=15 // pred_region
          %s165 = sand.u32 %s43, 1
          %s166 = scalar_lea.sflag [#allocation3], %s165
          %s167 = sand.u32 %s43, 1
          %s168 = smul.addr %s167, 8
          %s169 = scalar_lea.vmem [#allocation2], %s168
          %s171 = ssub.s32 128, 128
          %172 = vsyncadd %s166, %s171
          %s173 = sadd.s32 %s27, %s26
          %s174 = smul.addr %s173, 128
          %s175 = scalar_lea.hbm %s0, %s174
          %s177 = sshll.u32 %s169, 4
          %s178 = int_to_ptr.vmem [resolvable:$true] %s177
          %180 = dma.hbm_to_vmem [thread:$0]  %s175, 128, %s178, %s166
        $region20: #{tpu_custom_call.1} parent=15 // pred_fallthru
          _
      $region16: #{tpu_custom_call.1} parent=5 // pred_fallthru
        _
      %p181 = scmp.le.s32.totalorder 1, %s19
      %p182 = scmp.lt.s32.totalorder %s19, 3
      %p183 = pnand %p181, %p182
      %p184 = pneg %p183
      // Predicated region
      $region21: #{tpu_custom_call.1} parent=5 // pred_check
        _
      $region22: #{tpu_custom_call.1} parent=5 // pred_check_branch
        %186 = sbr.rel (%p183) target = $region24
      $region23: #{tpu_custom_call.1} parent=5 // pred_region
        %s187 = ssub.s32 %s19, 1
        %s188 = sand.u32 %s46, 1
        %s189 = scalar_lea.sflag [#allocation3], %s188
        %s190 = sand.u32 %s46, 1
        %s191 = smul.addr %s190, 8
        %s192 = scalar_lea.vmem [#allocation2], %s191
        // Predicated region
        $region25: #{tpu_custom_call.1} parent=23 // pred_check
          %p193 = pneg %p59
        $region26: #{tpu_custom_call.1} parent=23 // pred_check_branch
          %195 = sbr.rel (%p193) target = $region28
        $region27: #{tpu_custom_call.1} parent=23 // pred_region
          %196 = dma.done %s189, 128
        $region28: #{tpu_custom_call.1} parent=23 // pred_fallthru
          _
        %s197 = sand.u32 %s46, 1
        %s198 = scalar_lea.sflag [#allocation3], %s197
        %s199 = sand.u32 %s46, 1
        %s200 = smul.addr %s199, 8
        %s201 = scalar_lea.vmem [#allocation2], %s200
        %p202 = pneg %p59
        %p203 = pneg %p56
        %p204 = pneg %p87
        %p205 = pneg %p84
        %s206 = sand.u32 %s74, 1
        %s207 = scalar_lea.sflag [#allocation4], %s206
        %s208 = sand.u32 %s74, 1
        %s209 = smul.addr %s208, 8
        %s210 = scalar_lea.vmem [#allocation5], %s209
        %p211 = pneg %p115
        %p212 = pneg %p112
        %s213 = sand.u32 %s24, 1
        %s214 = scalar_lea.sflag [#allocation7], %s213
        %s215 = sand.u32 %s102, 1
        %s216 = scalar_lea.vmem [#allocation6], %s215
        %p217 = pneg %p143
        %p218 = pneg %p140
        %s219 = sand.u32 %s24, 1
        %s220 = scalar_lea.sflag [#allocation7], %s219
        %s221 = sand.u32 %s130, 1
        %s222 = scalar_lea.vmem [#allocation8], %s221
        %v223 = vld [vmem:[%s192] sm:$0xff]
        %vm224 = vcmask 261120
        %v225 = vsel %vm224, %v223, 0.0
        %v226 = vrot.slane %v225, 4
        %v227 = vadd.f32 %v225, %v226
        %v228 = vrot.slane %v227, 2
        %v229 = vadd.f32 %v227, %v228
        %v230 = vrot.slane %v229, 1
        %v231 = vadd.f32 %v229, %v230
        %v232 = vrcp.pop 8.0
        %v233 = vmul.f32 %v231, %v232
        %v234 = vsub.f32 %v223, %v233
        %v235 = vmul.f32 %v234, %v234
        %v236 = vsel %vm224, %v235, 0.0
        %v237 = vrot.slane %v236, 4
        %v238 = vadd.f32 %v236, %v237
        %v239 = vrot.slane %v238, 2
        %v240 = vadd.f32 %v238, %v239
        %v241 = vrot.slane %v240, 1
        %v242 = vadd.f32 %v240, %v241
        %v243 = vmul.f32 %v242, %v232
        %v244 = vadd.f32 %v243, 1e-05
        %v245 = vrsqrt.pop %v244
        %v246 = vmul.f32 %v234, %v245
        %247 = vst.msk [vmem:[%s210] sm:$0xff] %vm224, %v246
        %vm248 = vcmask 253952
        %249 = vst.msk [vmem:[%s216] sm:$0x1] %vm248, %v233
        %v250 = vrsqrt.pop %v244
        %v251 = vmul.f32 %v244, %v250
        %vm252 = vcmp.eq.f32.partialorder %v244, inf
        %v253 = vsel %vm252, %v244, %v251
        %vm254 = vcmp.eq.f32.partialorder %v244, 0.0
        %v255 = vand.u32 %v244, 2147483648
        %v256 = vsel %vm254, %v255, %v253
        %257 = vst.msk [vmem:[%s222] sm:$0x1] %vm248, %v256
        %s258 = sand.u32 %s74, 1
        %s259 = scalar_lea.sflag [#allocation4], %s258
        %s260 = sand.u32 %s74, 1
        %s261 = smul.addr %s260, 8
        %s262 = scalar_lea.vmem [#allocation5], %s261
        %s263 = sand.u32 %s24, 1
        %s264 = scalar_lea.sflag [#allocation7], %s263
        %s265 = sand.u32 %s102, 1
        %s266 = scalar_lea.vmem [#allocation6], %s265
        %s267 = sand.u32 %s24, 1
        %s268 = scalar_lea.sflag [#allocation7], %s267
        %s269 = sand.u32 %s130, 1
        %s270 = scalar_lea.vmem [#allocation8], %s269
        // Predicated region
        $region29: #{tpu_custom_call.1} parent=23 // pred_check
          %p271 = pneg %p84
        $region30: #{tpu_custom_call.1} parent=23 // pred_check_branch
          %273 = sbr.rel (%p271) target = $region32
        $region31: #{tpu_custom_call.1} parent=23 // pred_region
          %s275 = ssub.s32 128, 128
          %276 = vsyncadd %s259, %s275
          %s277 = sadd.s32 %s29, %s28
          %s278 = smul.addr %s277, 128
          %s279 = scalar_lea.hbm %s1, %s278
          %s281 = sshll.u32 %s262, 4
          %s282 = int_to_ptr.vmem [resolvable:$true] %s281
          %284 = dma.vmem_to_hbm [thread:$0]  %s282, 128, %s279, %s259
        $region32: #{tpu_custom_call.1} parent=23 // pred_fallthru
          _
        // Predicated region
        $region33: #{tpu_custom_call.1} parent=23 // pred_check
          %p285 = pneg %p112
        $region34: #{tpu_custom_call.1} parent=23 // pred_check_branch
          %287 = sbr.rel (%p285) target = $region36
        $region35: #{tpu_custom_call.1} parent=23 // pred_region
          %s289 = ssub.s32 16, 16
          %290 = vsyncadd %s264, %s289
          %s291 = sadd.s32 %s29, %s28
          %s292 = smul.addr %s291, 16
          %s293 = scalar_lea.hbm %s2, %s292
          %s295 = sshll.u32 %s266, 4
          %s296 = int_to_ptr.vmem [resolvable:$true] %s295
          %298 = dma.vmem_to_hbm [thread:$0]  %s296, 16, %s293, %s264
        $region36: #{tpu_custom_call.1} parent=23 // pred_fallthru
          _
        // Predicated region
        $region37: #{tpu_custom_call.1} parent=23 // pred_check
          %p299 = pneg %p140
        $region38: #{tpu_custom_call.1} parent=23 // pred_check_branch
          %301 = sbr.rel (%p299) target = $region40
        $region39: #{tpu_custom_call.1} parent=23 // pred_region
          %s303 = ssub.s32 16, 16
          %304 = vsyncadd %s268, %s303
          %s305 = sadd.s32 %s29, %s28
          %s306 = smul.addr %s305, 16
          %s307 = scalar_lea.hbm %s3, %s306
          %s309 = sshll.u32 %s270, 4
          %s310 = int_to_ptr.vmem [resolvable:$true] %s309
          %312 = dma.vmem_to_hbm [thread:$0]  %s310, 16, %s307, %s268
        $region40: #{tpu_custom_call.1} parent=23 // pred_fallthru
          _
      $region24: #{tpu_custom_call.1} parent=5 // pred_fallthru
        _
      %p313 = scmp.le.s32.totalorder 2, %s19
      // Predicated region
      $region41: #{tpu_custom_call.1} parent=5 // pred_check
        %p314 = pneg %p313
      $region42: #{tpu_custom_call.1} parent=5 // pred_check_branch
        %316 = sbr.rel (%p314) target = $region44
      $region43: #{tpu_custom_call.1} parent=5 // pred_region
        %s317 = ssub.s32 %s19, 2
        // Predicated region
        $region45: #{tpu_custom_call.1} parent=43 // pred_check
          %p318 = pneg %p90
        $region46: #{tpu_custom_call.1} parent=43 // pred_check_branch
          %320 = sbr.rel (%p318) target = $region48
        $region47: #{tpu_custom_call.1} parent=43 // pred_region
          %s321 = sand.u32 %s75, 1
          %s322 = scalar_lea.sflag [#allocation4], %s321
          %s323 = sand.u32 %s75, 1
          %s324 = smul.addr %s323, 8
          %s325 = scalar_lea.vmem [#allocation5], %s324
          %326 = dma.done %s322, 128
        $region48: #{tpu_custom_call.1} parent=43 // pred_fallthru
          _
        // Predicated region
        $region49: #{tpu_custom_call.1} parent=43 // pred_check
          %p327 = pneg %p118
        $region50: #{tpu_custom_call.1} parent=43 // pred_check_branch
          %329 = sbr.rel (%p327) target = $region52
        $region51: #{tpu_custom_call.1} parent=43 // pred_region
          %s330 = sand.u32 %s25, 1
          %s331 = scalar_lea.sflag [#allocation7], %s330
          %s332 = sand.u32 %s103, 1
          %s333 = scalar_lea.vmem [#allocation6], %s332
          %334 = dma.done %s331, 16
        $region52: #{tpu_custom_call.1} parent=43 // pred_fallthru
          _
        // Predicated region
        $region53: #{tpu_custom_call.1} parent=43 // pred_check
          %p335 = pneg %p146
        $region54: #{tpu_custom_call.1} parent=43 // pred_check_branch
          %337 = sbr.rel (%p335) target = $region56
        $region55: #{tpu_custom_call.1} parent=43 // pred_region
          %s338 = sand.u32 %s25, 1
          %s339 = scalar_lea.sflag [#allocation7], %s338
          %s340 = sand.u32 %s131, 1
          %s341 = scalar_lea.vmem [#allocation8], %s340
          %342 = dma.done %s339, 16
        $region56: #{tpu_custom_call.1} parent=43 // pred_fallthru
          _
      $region44: #{tpu_custom_call.1} parent=5 // pred_fallthru
        _
    $region6: #{tpu_custom_call.1} parent=1 // loop_footer
      %s23 = sadd.s32 1, %s19
    $region7: #{tpu_custom_call.1} parent=1 // loop_footer_branch
      %18 = sbr.rel target = $region3
    $region8: #{tpu_custom_call.1} parent=1 // loop_exit
      _
    %343 = vsyncpa [#allocation3], 1
    %s344 = scalar_lea.sflag [#allocation3], 1
    %345 = vsyncpa %s344, 1
    %346 = vsyncpa [#allocation4], 1
    %s347 = scalar_lea.sflag [#allocation4], 1
    %348 = vsyncpa %s347, 1
    %349 = vsyncpa [#allocation7], 1
    %s350 = scalar_lea.sflag [#allocation7], 1
    %351 = vsyncpa %s350, 1

</llo_original>
